<compile_context>
chip_gen: v7x
topology: tpu7x:2x2x1
jax: 0.10.0
libtpu: 0.0.40
codegen_flags: <defaults>
</compile_context>

<pallas_src>
import functools

import jax
import jax.numpy as jnp
from jax import lax
from jax.experimental import pallas as pl
from jax.experimental.pallas import tpu as pltpu


# ----------------------- Linear: token-tiled x @ W + b ------------------------

def _linear_kernel(x_ref, w_ref, b_ref, o_ref):
    # x: (TM, Din) tile, w: (Din, Dout) resident, b: (1, Dout) resident.
    y = jnp.dot(x_ref[...], w_ref[...], preferred_element_type=jnp.float32)
    o_ref[...] = (y + b_ref[...]).astype(o_ref.dtype)


def _linear(x2d, w, b, *, tm=512):
    """(M, Din) @ (Din, Dout) + b via Pallas, tiled over tokens."""
    M, Din = x2d.shape
    Dout = w.shape[1]
    tm = min(tm, M)
    m_pad = pl.cdiv(M, tm) * tm
    if m_pad != M:
        x2d = jnp.pad(x2d, ((0, m_pad - M), (0, 0)))

    out = pl.pallas_call(
        _linear_kernel,
        out_shape=jax.ShapeDtypeStruct((m_pad, Dout), jnp.float32),
        grid_spec=pltpu.PrefetchScalarGridSpec(
            num_scalar_prefetch=0,
            grid=(m_pad // tm,),
            in_specs=[
                pl.BlockSpec((tm, Din), lambda i: (i, 0)),     # x tile
                pl.BlockSpec((Din, Dout), lambda i: (0, 0)),   # weight (resident)
                pl.BlockSpec((1, Dout), lambda i: (0, 0)),     # bias   (resident)
            ],
            out_specs=pl.BlockSpec((tm, Dout), lambda i: (i, 0)),
        ),
        compiler_params=pltpu.CompilerParams(
            dimension_semantics=("parallel",),
        ),
    )(x2d, w, b.reshape(1, Dout))
    return out[:M]


# -------------------- per-(batch, head) attention core ------------------------

def _attn_kernel(q_ref, k_ref, v_ref, bias_ref, o_ref, *, scale):
    q = q_ref[0]        # (TQ, hd)
    k = k_ref[0]        # (N,  hd)
    v = v_ref[0]        # (N,  hd)

    # scores = (q @ k^T) * scale + additive Bernoulli mask bias
    s = lax.dot_general(q, k, (((1,), (1,)), ((), ())),
                        preferred_element_type=jnp.float32)
    s = s * scale + bias_ref[0]

    # numerically stable softmax over keys (matches torch.softmax(dim=-1))
    m = jnp.max(s, axis=-1, keepdims=True)
    p = jnp.exp(s - m)
    l = jnp.sum(p, axis=-1, keepdims=True)
    attn = p / l

    o_ref[0] = jnp.dot(attn, v, preferred_element_type=jnp.float32).astype(o_ref.dtype)


def _attention_core(q, k, v, bias, scale, *, tq=256):
    """q, k, v: (BH, N, hd); bias: (BH, N, N). Returns (BH, N, hd)."""
    BH, N, hd = q.shape
    tq = min(tq, N)
    n_pad = pl.cdiv(N, tq) * tq
    if n_pad != N:
        q = jnp.pad(q, ((0, 0), (0, n_pad - N), (0, 0)))
        bias = jnp.pad(bias, ((0, 0), (0, n_pad - N), (0, 0)))

    kernel = functools.partial(_attn_kernel, scale=float(scale))
    out = pl.pallas_call(
        kernel,
        out_shape=jax.ShapeDtypeStruct((BH, n_pad, hd), jnp.float32),
        grid_spec=pltpu.PrefetchScalarGridSpec(
            num_scalar_prefetch=0,
            grid=(BH, n_pad // tq),
            in_specs=[
                pl.BlockSpec((1, tq, hd), lambda b, i: (b, i, 0)),  # q tile
                pl.BlockSpec((1, N, hd), lambda b, i: (b, 0, 0)),   # full K for head b
                pl.BlockSpec((1, N, hd), lambda b, i: (b, 0, 0)),   # full V for head b
                pl.BlockSpec((1, tq, N), lambda b, i: (b, i, 0)),   # mask-bias tile
            ],
            out_specs=pl.BlockSpec((1, tq, hd), lambda b, i: (b, i, 0)),
        ),
        compiler_params=pltpu.CompilerParams(
            dimension_semantics=("parallel", "parallel"),
        ),
    )(q, k, v, bias)
    return out[:, :N]


# ------------------------------- full forward ---------------------------------

@functools.partial(jax.jit, static_argnames=("heads", "head_dim"))
def attention_forward(x, w_qkv, b_qkv, w_proj, b_proj, mask_key, *, heads, head_dim):
    B, N, C = x.shape
    H = heads
    hd = C // H
    scale = float(head_dim) ** -0.5  # PyTorch uses the ctor head_dim for the scale

    # qkv projection (Pallas, token-tiled)
    qkv = _linear(x.reshape(B * N, C), w_qkv, b_qkv)               # (B*N, 3C)

    # reshape/permute to per-head layout, flatten (B, H) -> BH
    qkv = qkv.reshape(B, N, 3, H, hd)
    q = qkv[:, :, 0].transpose(0, 2, 1, 3).reshape(B * H, N, hd)
    k = qkv[:, :, 1].transpose(0, 2, 1, 3).reshape(B * H, N, hd)
    v = qkv[:, :, 2].transpose(0, 2, 1, 3).reshape(B * H, N, hd)

    # Bernoulli(0.5) additive logit mask: -1e12 where the draw is 1, else 0.
    # TODO(synk): generate this in-kernel with pltpu.prng_seed/prng_random_bits
    # once the deployment target supports the TPU hardware PRNG.
    drop = jax.random.bernoulli(mask_key, 0.5, (B * H, N, N))
    bias = jnp.where(drop, jnp.float32(-1e12), jnp.float32(0.0))

    # per-head attention (Pallas)
    o = _attention_core(q, k, v, bias, scale)                      # (B*H, N, hd)

    # (B, H, N, hd) -> transpose(1, 2) -> (B, N, C)
    o = o.reshape(B, H, N, hd).transpose(0, 2, 1, 3).reshape(B * N, C)

    # output projection (Pallas); nn.Dropout(p=0.0) is an identity and omitted.
    out = _linear(o, w_proj, b_proj).reshape(B, N, C)
    return out


def init_params(key, dim):
    """nn.Linear default init U[-1/sqrt(fan_in), 1/sqrt(fan_in)]; weights stored (in, out)."""
    k1, k2, k3, k4 = jax.random.split(key, 4)
    bound = float(dim) ** -0.5
    w_qkv = jax.random.uniform(k1, (dim, 3 * dim), jnp.float32, -bound, bound)
    b_qkv = jax.random.uniform(k2, (3 * dim,), jnp.float32, -bound, bound)
    w_proj = jax.random.uniform(k3, (dim, dim), jnp.float32, -bound, bound)
    b_proj = jax.random.uniform(k4, (dim,), jnp.float32, -bound, bound)
    return w_qkv, b_qkv, w_proj, b_proj


if __name__ == "__main__":
    key = jax.random.PRNGKey(0)
    k_x, k_p, k_mask = jax.random.split(key, 3)

    # small but lane-dense shapes: dim multiple of 128, head_dim == dim // heads
    B, N, dim, heads, head_dim = 2, 16, 128, 4, 32
    x = jax.random.normal(k_x, (B, N, dim), jnp.float32)
    w_qkv, b_qkv, w_proj, b_proj = init_params(k_p, dim)

    out = attention_forward(x, w_qkv, b_qkv, w_proj, b_proj, k_mask,
                            heads=heads, head_dim=head_dim)
    jax.block_until_ready(out)

    assert out.shape == (B, N, dim)
    assert out.dtype == jnp.float32
    print("KERNEL_OK")
</pallas_src>

<mosaic_0001>
module attributes {stable_mosaic.version = 11 : i64} {
  func.func @_linear_kernel(%arg0: i32, %arg1: memref<32x128xf32, #tpu.memory_space<vmem>>, %arg2: memref<128x384xf32, #tpu.memory_space<vmem>>, %arg3: memref<1x384xf32, #tpu.memory_space<vmem>>, %arg4: memref<32x384xf32, #tpu.memory_space<vmem>>) attributes {dimension_semantics = [#tpu.dimension_semantics<parallel>], iteration_bounds = array<i64: 1>, scalar_prefetch = 0 : i64, scratch_operands = 0 : i64, tpu.core_type = #tpu.core_type<tc>, window_params = [{transform_indices = @transform_0, window_bounds = array<i64: 32, 128>}, {pipeline_mode = #tpu.pipeline_mode<synchronous>, transform_indices = @transform_1, window_bounds = array<i64: 128, 384>}, {pipeline_mode = #tpu.pipeline_mode<synchronous>, transform_indices = @transform_2, window_bounds = array<i64: 1, 384>}, {transform_indices = @transform_3, window_bounds = array<i64: 32, 384>}]} {
    %c0 = arith.constant 0 : index
    %c0_0 = arith.constant 0 : index
    %0 = vector.load %arg1[%c0, %c0_0] : memref<32x128xf32, #tpu.memory_space<vmem>>, vector<32x128xf32>
    %c0_1 = arith.constant 0 : index
    %c0_2 = arith.constant 0 : index
    %1 = vector.load %arg2[%c0_1, %c0_2] : memref<128x384xf32, #tpu.memory_space<vmem>>, vector<128x384xf32>
    %cst = arith.constant dense<0.000000e+00> : vector<32x384xf32>
    %2 = tpu.matmul %0, %1, %cst {dimension_numbers = #tpu.dot_dimension_numbers<[1], [0], [0], [1], [0, 0, 1, 1], [], []>} : vector<32x128xf32>, vector<128x384xf32>, vector<32x384xf32> -> vector<32x384xf32>
    %c0_3 = arith.constant 0 : index
    %c0_4 = arith.constant 0 : index
    %3 = vector.load %arg3[%c0_3, %c0_4] : memref<1x384xf32, #tpu.memory_space<vmem>>, vector<1x384xf32>
    %4 = vector.broadcast %3 : vector<1x384xf32> to vector<32x384xf32>
    %5 = arith.addf %2, %4 : vector<32x384xf32>
    %c0_5 = arith.constant 0 : index
    %c0_6 = arith.constant 0 : index
    %6 = vector.load %arg4[%c0_5, %c0_6] : memref<32x384xf32, #tpu.memory_space<vmem>>, vector<32x384xf32>
    tpu.vector_store %arg4[%c0_5, %c0_6], %5 {strides = array<i32>} : memref<32x384xf32, #tpu.memory_space<vmem>>, vector<32x384xf32>,
    return
  }
  func.func @transform_0(%arg0: i32) -> (i32, i32) {
    %c0_i32 = arith.constant 0 : i32
    %c0_i32_0 = arith.constant 0 : i32
    return %arg0, %c0_i32 : i32, i32
  }
  func.func @transform_1(%arg0: i32) -> (i32, i32) {
    %c0_i32 = arith.constant 0 : i32
    %c0_i32_0 = arith.constant 0 : i32
    %c0_i32_1 = arith.constant 0 : i32
    return %c0_i32, %c0_i32_0 : i32, i32
  }
  func.func @transform_2(%arg0: i32) -> (i32, i32) {
    %c0_i32 = arith.constant 0 : i32
    %c0_i32_0 = arith.constant 0 : i32
    %c0_i32_1 = arith.constant 0 : i32
    return %c0_i32, %c0_i32_0 : i32, i32
  }
  func.func @transform_3(%arg0: i32) -> (i32, i32) {
    %c0_i32 = arith.constant 0 : i32
    %c0_i32_0 = arith.constant 0 : i32
    return %arg0, %c0_i32 : i32, i32
  }
}

module attributes {stable_mosaic.version = 11 : i64} {
  func.func @_attn_kernel(%arg0: i32, %arg1: i32, %arg2: memref<1x16x32xf32, #tpu.memory_space<vmem>>, %arg3: memref<1x16x32xf32, #tpu.memory_space<vmem>>, %arg4: memref<1x16x32xf32, #tpu.memory_space<vmem>>, %arg5: memref<1x16x16xf32, #tpu.memory_space<vmem>>, %arg6: memref<1x16x32xf32, #tpu.memory_space<vmem>>) attributes {dimension_semantics = [#tpu.dimension_semantics<parallel>, #tpu.dimension_semantics<parallel>], iteration_bounds = array<i64: 8, 1>, scalar_prefetch = 0 : i64, scratch_operands = 0 : i64, tpu.core_type = #tpu.core_type<tc>, window_params = [{transform_indices = @transform_0, window_bounds = array<i64: 1, 16, 32>}, {transform_indices = @transform_1, window_bounds = array<i64: 1, 16, 32>}, {transform_indices = @transform_2, window_bounds = array<i64: 1, 16, 32>}, {transform_indices = @transform_3, window_bounds = array<i64: 1, 16, 16>}, {transform_indices = @transform_4, window_bounds = array<i64: 1, 16, 32>}]} {
    %c0 = arith.constant 0 : index
    %c0_0 = arith.constant 0 : index
    %c0_1 = arith.constant 0 : index
    %0 = vector.load %arg2[%c0, %c0_0, %c0_1] : memref<1x16x32xf32, #tpu.memory_space<vmem>>, vector<1x16x32xf32>
    %1 = vector.shape_cast %0 : vector<1x16x32xf32> to vector<16x32xf32>
    %c0_2 = arith.constant 0 : index
    %c0_3 = arith.constant 0 : index
    %c0_4 = arith.constant 0 : index
    %2 = vector.load %arg3[%c0_2, %c0_3, %c0_4] : memref<1x16x32xf32, #tpu.memory_space<vmem>>, vector<1x16x32xf32>
    %3 = vector.shape_cast %2 : vector<1x16x32xf32> to vector<16x32xf32>
    %c0_5 = arith.constant 0 : index
    %c0_6 = arith.constant 0 : index
    %c0_7 = arith.constant 0 : index
    %4 = vector.load %arg4[%c0_5, %c0_6, %c0_7] : memref<1x16x32xf32, #tpu.memory_space<vmem>>, vector<1x16x32xf32>
    %5 = vector.shape_cast %4 : vector<1x16x32xf32> to vector<16x32xf32>
    %cst = arith.constant dense<0.000000e+00> : vector<16x16xf32>
    %6 = tpu.matmul %1, %3, %cst {dimension_numbers = #tpu.dot_dimension_numbers<[1], [1], [0], [0], [0, 0, 1, 0], [], []>} : vector<16x32xf32>, vector<16x32xf32>, vector<16x16xf32> -> vector<16x16xf32>
    %cst_8 = arith.constant 0.176776692 : f32
    %7 = vector.broadcast %cst_8 : f32 to vector<16x16xf32>
    %8 = arith.mulf %6, %7 : vector<16x16xf32>
    %c0_9 = arith.constant 0 : index
    %c0_10 = arith.constant 0 : index
    %c0_11 = arith.constant 0 : index
    %9 = vector.load %arg5[%c0_9, %c0_10, %c0_11] : memref<1x16x16xf32, #tpu.memory_space<vmem>>, vector<1x16x16xf32>
    %10 = vector.shape_cast %9 : vector<1x16x16xf32> to vector<16x16xf32>
    %11 = arith.addf %8, %10 : vector<16x16xf32>
    %cst_12 = arith.constant dense<0xFF800000> : vector<16xf32>
    %12 = vector.multi_reduction <maximumf>, %11, %cst_12 [1] : vector<16x16xf32> to vector<16xf32>
    %13 = vector.shape_cast %12 : vector<16xf32> to vector<16x1xf32>
    %14 = vector.broadcast %13 : vector<16x1xf32> to vector<16x16xf32>
    %15 = arith.subf %11, %14 : vector<16x16xf32>
    %16 = math.exp %15 : vector<16x16xf32>
    %cst_13 = arith.constant dense<0.000000e+00> : vector<16xf32>
    %17 = vector.multi_reduction <add>, %16, %cst_13 [1] : vector<16x16xf32> to vector<16xf32>
    %18 = vector.shape_cast %17 : vector<16xf32> to vector<16x1xf32>
    %19 = vector.broadcast %18 : vector<16x1xf32> to vector<16x16xf32>
    %20 = arith.divf %16, %19 : vector<16x16xf32>
    %cst_14 = arith.constant dense<0.000000e+00> : vector<16x32xf32>
    %21 = tpu.matmul %20, %5, %cst_14 {dimension_numbers = #tpu.dot_dimension_numbers<[1], [0], [0], [1], [0, 0, 1, 1], [], []>} : vector<16x16xf32>, vector<16x32xf32>, vector<16x32xf32> -> vector<16x32xf32>
    %c0_15 = arith.constant 0 : index
    %c0_16 = arith.constant 0 : index
    %c0_17 = arith.constant 0 : index
    %22 = vector.load %arg6[%c0_15, %c0_16, %c0_17] : memref<1x16x32xf32, #tpu.memory_space<vmem>>, vector<1x16x32xf32>
    %23 = vector.shape_cast %22 : vector<1x16x32xf32> to vector<16x32xf32>
    %24 = vector.shape_cast %21 : vector<16x32xf32> to vector<1x16x32xf32>
    tpu.vector_store %arg6[%c0_15, %c0_16, %c0_17], %24 {strides = array<i32>} : memref<1x16x32xf32, #tpu.memory_space<vmem>>, vector<1x16x32xf32>,
    return
  }
  func.func @transform_0(%arg0: i32, %arg1: i32) -> (i32, i32, i32) {
    %c0_i32 = arith.constant 0 : i32
    %c0_i32_0 = arith.constant 0 : i32
    return %arg0, %arg1, %c0_i32 : i32, i32, i32
  }
  func.func @transform_1(%arg0: i32, %arg1: i32) -> (i32, i32, i32) {
    %c0_i32 = arith.constant 0 : i32
    %c0_i32_0 = arith.constant 0 : i32
    %c0_i32_1 = arith.constant 0 : i32
    return %arg0, %c0_i32, %c0_i32_0 : i32, i32, i32
  }
  func.func @transform_2(%arg0: i32, %arg1: i32) -> (i32, i32, i32) {
    %c0_i32 = arith.constant 0 : i32
    %c0_i32_0 = arith.constant 0 : i32
    %c0_i32_1 = arith.constant 0 : i32
    return %arg0, %c0_i32, %c0_i32_0 : i32, i32, i32
  }
  func.func @transform_3(%arg0: i32, %arg1: i32) -> (i32, i32, i32) {
    %c0_i32 = arith.constant 0 : i32
    %c0_i32_0 = arith.constant 0 : i32
    return %arg0, %arg1, %c0_i32 : i32, i32, i32
  }
  func.func @transform_4(%arg0: i32, %arg1: i32) -> (i32, i32, i32) {
    %c0_i32 = arith.constant 0 : i32
    %c0_i32_0 = arith.constant 0 : i32
    return %arg0, %arg1, %c0_i32 : i32, i32, i32
  }
}

module attributes {stable_mosaic.version = 11 : i64} {
  func.func @_linear_kernel(%arg0: i32, %arg1: memref<32x128xf32, #tpu.memory_space<vmem>>, %arg2: memref<128x128xf32, #tpu.memory_space<vmem>>, %arg3: memref<1x128xf32, #tpu.memory_space<vmem>>, %arg4: memref<32x128xf32, #tpu.memory_space<vmem>>) attributes {dimension_semantics = [#tpu.dimension_semantics<parallel>], iteration_bounds = array<i64: 1>, scalar_prefetch = 0 : i64, scratch_operands = 0 : i64, tpu.core_type = #tpu.core_type<tc>, window_params = [{transform_indices = @transform_0, window_bounds = array<i64: 32, 128>}, {pipeline_mode = #tpu.pipeline_mode<synchronous>, transform_indices = @transform_1, window_bounds = array<i64: 128, 128>}, {pipeline_mode = #tpu.pipeline_mode<synchronous>, transform_indices = @transform_2, window_bounds = array<i64: 1, 128>}, {transform_indices = @transform_3, window_bounds = array<i64: 32, 128>}]} {
    %c0 = arith.constant 0 : index
    %c0_0 = arith.constant 0 : index
    %0 = vector.load %arg1[%c0, %c0_0] : memref<32x128xf32, #tpu.memory_space<vmem>>, vector<32x128xf32>
    %c0_1 = arith.constant 0 : index
    %c0_2 = arith.constant 0 : index
    %1 = vector.load %arg2[%c0_1, %c0_2] : memref<128x128xf32, #tpu.memory_space<vmem>>, vector<128x128xf32>
    %cst = arith.constant dense<0.000000e+00> : vector<32x128xf32>
    %2 = tpu.matmul %0, %1, %cst {dimension_numbers = #tpu.dot_dimension_numbers<[1], [0], [0], [1], [0, 0, 1, 1], [], []>} : vector<32x128xf32>, vector<128x128xf32>, vector<32x128xf32> -> vector<32x128xf32>
    %c0_3 = arith.constant 0 : index
    %c0_4 = arith.constant 0 : index
    %3 = vector.load %arg3[%c0_3, %c0_4] : memref<1x128xf32, #tpu.memory_space<vmem>>, vector<1x128xf32>
    %4 = vector.broadcast %3 : vector<1x128xf32> to vector<32x128xf32>
    %5 = arith.addf %2, %4 : vector<32x128xf32>
    %c0_5 = arith.constant 0 : index
    %c0_6 = arith.constant 0 : index
    %6 = vector.load %arg4[%c0_5, %c0_6] : memref<32x128xf32, #tpu.memory_space<vmem>>, vector<32x128xf32>
    tpu.vector_store %arg4[%c0_5, %c0_6], %5 {strides = array<i32>} : memref<32x128xf32, #tpu.memory_space<vmem>>, vector<32x128xf32>,
    return
  }
  func.func @transform_0(%arg0: i32) -> (i32, i32) {
    %c0_i32 = arith.constant 0 : i32
    %c0_i32_0 = arith.constant 0 : i32
    return %arg0, %c0_i32 : i32, i32
  }
  func.func @transform_1(%arg0: i32) -> (i32, i32) {
    %c0_i32 = arith.constant 0 : i32
    %c0_i32_0 = arith.constant 0 : i32
    %c0_i32_1 = arith.constant 0 : i32
    return %c0_i32, %c0_i32_0 : i32, i32
  }
  func.func @transform_2(%arg0: i32) -> (i32, i32) {
    %c0_i32 = arith.constant 0 : i32
    %c0_i32_0 = arith.constant 0 : i32
    %c0_i32_1 = arith.constant 0 : i32
    return %c0_i32, %c0_i32_0 : i32, i32
  }
  func.func @transform_3(%arg0: i32) -> (i32, i32) {
    %c0_i32 = arith.constant 0 : i32
    %c0_i32_0 = arith.constant 0 : i32
    return %arg0, %c0_i32 : i32, i32
  }
}

</mosaic_0001>

<llo_original>
// kernel: attention_forward.3
$region0: #{attention_forward.3}
  #allocation0 [shape = 'u32[]', space=smem, size = 0x4, offset = 0x4, fixed_abs, tag = 'smem constant byte address 0x4 - core index']
  #allocation1 [shape = 'u32[144,128]{1,0:T(1,128)}', space=vmem, size = 0x12000, scoped, tag = 'internal scratch']
  %s0 = inlined_call_operand.hbm [shape: f32[32,128], index: 0, kind: input, shape index: {}]
  %s1 = inlined_call_operand.hbm [shape: f32[128,384], index: 1, kind: input, shape index: {}]
  %s2 = inlined_call_operand.vmem [shape: f32[1,384], index: 2, kind: input, shape index: {}]
  %s3 = inlined_call_operand.vmem [shape: f32[32,384], index: 3, kind: output, shape index: {}]
  %s4 = sld [smem:[#allocation0]]
  $region30: #{attention_forward.3} parent=0
    _
  %s6 = ssub.s32 1, %s4
  %s7 = scalar_select 0, %s6, %s4
  $region1: #{attention_forward.3} parent=0
    #allocation2 [shape = 'u8[16384]{0}', space=vmem, size = 0x4000, scoped, tag = 'input window, operand 0, single buffered']
    #allocation3 [shape = 's32[1]{0}', space=sflag, size = 0x4, scoped, tag = 'scoped memory for attention_forward.3']
    #allocation4 [shape = 'u8[196608]{0}', space=vmem, size = 0x30000, scoped, tag = 'input window, operand 1, single buffered']
    #allocation5 [shape = 's32[1]{0}', space=sflag, size = 0x4, scoped, tag = 'scoped memory for attention_forward.3']
    %8 = vsyncpa [#allocation3], 0
    %9 = vsyncpa [#allocation5], 0
    // Predicated region
    $region2: #{attention_forward.3} parent=1 // pred_check
      _
    $region3: #{attention_forward.3} parent=1 // pred_check_branch
      %11 = sbr.rel (0) target = $region5
    $region4: #{attention_forward.3} parent=1 // pred_region
      %s13 = ssub.s32 512, 512
      %14 = vsyncadd [#allocation3], %s13
      %s15 = sshll.u32 [#allocation2], 4
      %s16 = int_to_ptr.vmem [resolvable:$true] %s15
      %21 = dma.hbm_to_vmem [thread:$0]  %s0, 512, %s16, [#allocation3], 128, 128, 8
    $region5: #{attention_forward.3} parent=1 // pred_fallthru
      _
    // Predicated region
    $region6: #{attention_forward.3} parent=1 // pred_check
      _
    $region7: #{attention_forward.3} parent=1 // pred_check_branch
      %23 = sbr.rel (0) target = $region9
    $region8: #{attention_forward.3} parent=1 // pred_region
      %s25 = ssub.s32 6144, 6144
      %26 = vsyncadd [#allocation5], %s25
      %s27 = sshll.u32 [#allocation4], 4
      %s28 = int_to_ptr.vmem [resolvable:$true] %s27
      %33 = dma.hbm_to_vmem [thread:$0]  %s1, 6144, %s28, [#allocation5], 384, 384, 24
    $region9: #{attention_forward.3} parent=1 // pred_fallthru
      _
    // Predicated region
    $region10: #{attention_forward.3} parent=1 // pred_check
      _
    $region11: #{attention_forward.3} parent=1 // pred_check_branch
      %35 = sbr.rel (0) target = $region13
    $region12: #{attention_forward.3} parent=1 // pred_region
      _
    $region13: #{attention_forward.3} parent=1 // pred_fallthru
      _
    // Predicated region
    $region14: #{attention_forward.3} parent=1 // pred_check
      _
    $region15: #{attention_forward.3} parent=1 // pred_check_branch
      %37 = sbr.rel (0) target = $region17
    $region16: #{attention_forward.3} parent=1 // pred_region
      %38 = dma.done [#allocation3], 512
    $region17: #{attention_forward.3} parent=1 // pred_fallthru
      _
    // Predicated region
    $region18: #{attention_forward.3} parent=1 // pred_check
      _
    $region19: #{attention_forward.3} parent=1 // pred_check_branch
      %40 = sbr.rel (0) target = $region21
    $region20: #{attention_forward.3} parent=1 // pred_region
      %41 = dma.done [#allocation5], 6144
    $region21: #{attention_forward.3} parent=1 // pred_fallthru
      _
    %v42 = vld [vmem:[#allocation2] sm:$0xff]
    %v43 = vld [vmem:[#allocation2 + $0x8] sm:$0xff]
    %v44 = vld [vmem:[#allocation2 + $0x10] sm:$0xff]
    %v45 = vld [vmem:[#allocation2 + $0x18] sm:$0xff]
    %v46 = vld [vmem:[#allocation4] sm:$0xff]
    %v47 = vld [vmem:[#allocation4 + $0x8] sm:$0xff]
    %v48 = vld [vmem:[#allocation4 + $0x10] sm:$0xff]
    %v49 = vld [vmem:[#allocation4 + $0x18] sm:$0xff]
    %v50 = vld [vmem:[#allocation4 + $0x20] sm:$0xff]
    %v51 = vld [vmem:[#allocation4 + $0x28] sm:$0xff]
    %v52 = vld [vmem:[#allocation4 + $0x30] sm:$0xff]
    %v53 = vld [vmem:[#allocation4 + $0x38] sm:$0xff]
    %v54 = vld [vmem:[#allocation4 + $0x40] sm:$0xff]
    %v55 = vld [vmem:[#allocation4 + $0x48] sm:$0xff]
    %v56 = vld [vmem:[#allocation4 + $0x50] sm:$0xff]
    %v57 = vld [vmem:[#allocation4 + $0x58] sm:$0xff]
    %v58 = vld [vmem:[#allocation4 + $0x60] sm:$0xff]
    %v59 = vld [vmem:[#allocation4 + $0x68] sm:$0xff]
    %v60 = vld [vmem:[#allocation4 + $0x70] sm:$0xff]
    %v61 = vld [vmem:[#allocation4 + $0x78] sm:$0xff]
    %v62 = vld [vmem:[#allocation4 + $0x80] sm:$0xff]
    %v63 = vld [vmem:[#allocation4 + $0x88] sm:$0xff]
    %v64 = vld [vmem:[#allocation4 + $0x90] sm:$0xff]
    %v65 = vld [vmem:[#allocation4 + $0x98] sm:$0xff]
    %v66 = vld [vmem:[#allocation4 + $0xa0] sm:$0xff]
    %v67 = vld [vmem:[#allocation4 + $0xa8] sm:$0xff]
    %v68 = vld [vmem:[#allocation4 + $0xb0] sm:$0xff]
    %v69 = vld [vmem:[#allocation4 + $0xb8] sm:$0xff]
    %v70 = vld [vmem:[#allocation4 + $0xc0] sm:$0xff]
    %v71 = vld [vmem:[#allocation4 + $0xc8] sm:$0xff]
    %v72 = vld [vmem:[#allocation4 + $0xd0] sm:$0xff]
    %v73 = vld [vmem:[#allocation4 + $0xd8] sm:$0xff]
    %v74 = vld [vmem:[#allocation4 + $0xe0] sm:$0xff]
    %v75 = vld [vmem:[#allocation4 + $0xe8] sm:$0xff]
    %v76 = vld [vmem:[#allocation4 + $0xf0] sm:$0xff]
    %v77 = vld [vmem:[#allocation4 + $0xf8] sm:$0xff]
    %v78 = vld [vmem:[#allocation4 + $0x100] sm:$0xff]
    %v79 = vld [vmem:[#allocation4 + $0x108] sm:$0xff]
    %v80 = vld [vmem:[#allocation4 + $0x110] sm:$0xff]
    %v81 = vld [vmem:[#allocation4 + $0x118] sm:$0xff]
    %v82 = vld [vmem:[#allocation4 + $0x120] sm:$0xff]
    %v83 = vld [vmem:[#allocation4 + $0x128] sm:$0xff]
    %v84 = vld [vmem:[#allocation4 + $0x130] sm:$0xff]
    %v85 = vld [vmem:[#allocation4 + $0x138] sm:$0xff]
    %v86 = vld [vmem:[#allocation4 + $0x140] sm:$0xff]
    %v87 = vld [vmem:[#allocation4 + $0x148] sm:$0xff]
    %v88 = vld [vmem:[#allocation4 + $0x150] sm:$0xff]
    %v89 = vld [vmem:[#allocation4 + $0x158] sm:$0xff]
    %v90 = vld [vmem:[#allocation4 + $0x160] sm:$0xff]
    %v91 = vld [vmem:[#allocation4 + $0x168] sm:$0xff]
    %v92 = vld [vmem:[#allocation4 + $0x170] sm:$0xff]
    %v93 = vld [vmem:[#allocation4 + $0x178] sm:$0xff]
    %v94 = vld [vmem:[%s2] sm:$0x7]
    %v96 = vlaneseq
    %v97 = vshrl.u32 %v96, 7
    %v98 = vsub.s32 0, %v97
    %v99 = vrot.slane %v94, %v98
    %v100 = vlaneseq
    %v101 = vshrl.u32 %v100, 7
    %v102 = vsub.s32 1, %v101
    %v103 = vrot.slane %v94, %v102
    %v104 = vlaneseq
    %v105 = vshrl.u32 %v104, 7
    %v106 = vsub.s32 2, %v105
    %v107 = vrot.slane %v94, %v106
    %111 = vmatprep.subr.mxu0 %v47
    %112 = vmatpush1.msra.mxu0 %v46
    %113 = vmatprep.subr.mxu0 %v50
    %114 = vmatpush1.msra.mxu0 %v49
    %115 = vmatprep.subr.mxu0 %v53
    %116 = vmatpush1.msra.mxu0 %v52
    %117 = vmatprep.subr.mxu0 %v56
    %118 = vmatpush1.msra.mxu0 %v55
    %119 = vmatprep.subr.mxu0 %v59
    %120 = vmatpush1.msra.mxu0 %v58
    %121 = vmatprep.subr.mxu0 %v62
    %122 = vmatpush1.msra.mxu0 %v61
    %123 = vmatprep.subr.mxu0 %v65
    %124 = vmatpush1.msra.mxu0 %v64
    %125 = vmatprep.subr.mxu0 %v68
    %126 = vmatpush1.msra.mxu0 %v67
    %127 = vmatprep.subr.mxu0 %v71
    %128 = vmatpush1.msra.mxu0 %v70
    %129 = vmatprep.subr.mxu0 %v74
    %130 = vmatpush1.msra.mxu0 %v73
    %131 = vmatprep.subr.mxu0 %v77
    %132 = vmatpush1.msra.mxu0 %v76
    %133 = vmatprep.subr.mxu0 %v80
    %134 = vmatpush1.msra.mxu0 %v79
    %135 = vmatprep.subr.mxu0 %v83
    %136 = vmatpush1.msra.mxu0 %v82
    %137 = vmatprep.subr.mxu0 %v86
    %138 = vmatpush1.msra.mxu0 %v85
    %139 = vmatprep.subr.mxu0 %v89
    %140 = vmatpush1.msra.mxu0 %v88
    %141 = vmatprep.subr.mxu0 %v92
    %142 = vmatpush1.msra.mxu0 %v91
    %143 = vmatprep.subr.mxu0 0.0
    %144 = vmatpush1.msra.mxu0 0.0
    %145 = vmatprep.subr.mxu0 0.0
    %146 = vmatpush1.msra.mxu0 0.0
    %147 = vmatprep.subr.mxu0 0.0
    %148 = vmatpush1.msra.mxu0 0.0
    %149 = vmatprep.subr.mxu0 0.0
    %150 = vmatpush1.msra.mxu0 0.0
    %151 = vmatprep.subr.mxu0 0.0
    %152 = vmatpush1.msra.mxu0 0.0
    %153 = vmatprep.subr.mxu0 0.0
    %154 = vmatpush1.msra.mxu0 0.0
    %155 = vmatprep.subr.mxu0 0.0
    %156 = vmatpush1.msra.mxu0 0.0
    %157 = vmatprep.subr.mxu0 0.0
    %158 = vmatpush1.msra.mxu0 0.0
    %159 = vmatprep.subr.mxu0 0.0
    %160 = vmatpush1.msra.mxu0 0.0
    %161 = vmatprep.subr.mxu0 0.0
    %162 = vmatpush1.msra.mxu0 0.0
    %163 = vmatprep.subr.mxu0 0.0
    %164 = vmatpush1.msra.mxu0 0.0
    %165 = vmatprep.subr.mxu0 0.0
    %166 = vmatpush1.msra.mxu0 0.0
    %167 = vmatprep.subr.mxu0 0.0
    %168 = vmatpush1.msra.mxu0 0.0
    %169 = vmatprep.subr.mxu0 0.0
    %170 = vmatpush1.msra.mxu0 0.0
    %171 = vmatprep.subr.mxu0 0.0
    %172 = vmatpush1.msra.mxu0 0.0
    %173 = vmatprep.subr.mxu0 0.0
    %174 = vmatpush1.msra.mxu0 0.0
    %175 = vmatprep.mubr.f32.mxu0 0.0
    %176 = vmatmul.mubr.f32.gmra.mrb[0].mxu0 %v42
    %v177 = vpop.f32.mrb[0].mxu0
    %v178 = vadd.f32 %v99, %v177
    %v179 = vpop.f32.mrb[0].mxu0
    %v180 = vadd.f32 %v103, %v179
    %181 = vmatprep.mubr.f32.mxu0 0.0
    %182 = vmatmul.mubr.f32.gmra.mrb[0].mxu0 %v43
    %v183 = vpop.f32.mrb[0].mxu0
    %v184 = vadd.f32 %v99, %v183
    %v185 = vpop.f32.mrb[0].mxu0
    %v186 = vadd.f32 %v103, %v185
    %187 = vmatprep.mubr.f32.mxu0 0.0
    %188 = vmatmul.mubr.f32.gmra.mrb[0].mxu0 %v44
    %v189 = vpop.f32.mrb[0].mxu0
    %v190 = vadd.f32 %v99, %v189
    %v191 = vpop.f32.mrb[0].mxu0
    %v192 = vadd.f32 %v103, %v191
    %193 = vmatprep.mubr.f32.mxu0 0.0
    %194 = vmatmul.mubr.f32.gmra.mrb[0].mxu0 %v45
    %v195 = vpop.f32.mrb[0].mxu0
    %v196 = vadd.f32 %v99, %v195
    %v197 = vpop.f32.mrb[0].mxu0
    %v198 = vadd.f32 %v103, %v197
    %199 = vdwg.mxu0
    %200 = vmatprep.subr.mxu0 0.0
    %201 = vmatpush1.msra.mxu0 %v48
    %202 = vmatprep.subr.mxu0 0.0
    %203 = vmatpush1.msra.mxu0 %v51
    %204 = vmatprep.subr.mxu0 0.0
    %205 = vmatpush1.msra.mxu0 %v54
    %206 = vmatprep.subr.mxu0 0.0
    %207 = vmatpush1.msra.mxu0 %v57
    %208 = vmatprep.subr.mxu0 0.0
    %209 = vmatpush1.msra.mxu0 %v60
    %210 = vmatprep.subr.mxu0 0.0
    %211 = vmatpush1.msra.mxu0 %v63
    %212 = vmatprep.subr.mxu0 0.0
    %213 = vmatpush1.msra.mxu0 %v66
    %214 = vmatprep.subr.mxu0 0.0
    %215 = vmatpush1.msra.mxu0 %v69
    %216 = vmatprep.subr.mxu0 0.0
    %217 = vmatpush1.msra.mxu0 %v72
    %218 = vmatprep.subr.mxu0 0.0
    %219 = vmatpush1.msra.mxu0 %v75
    %220 = vmatprep.subr.mxu0 0.0
    %221 = vmatpush1.msra.mxu0 %v78
    %222 = vmatprep.subr.mxu0 0.0
    %223 = vmatpush1.msra.mxu0 %v81
    %224 = vmatprep.subr.mxu0 0.0
    %225 = vmatpush1.msra.mxu0 %v84
    %226 = vmatprep.subr.mxu0 0.0
    %227 = vmatpush1.msra.mxu0 %v87
    %228 = vmatprep.subr.mxu0 0.0
    %229 = vmatpush1.msra.mxu0 %v90
    %230 = vmatprep.subr.mxu0 0.0
    %231 = vmatpush1.msra.mxu0 %v93
    %232 = vmatprep.subr.mxu0 0.0
    %233 = vmatpush1.msra.mxu0 0.0
    %234 = vmatprep.subr.mxu0 0.0
    %235 = vmatpush1.msra.mxu0 0.0
    %236 = vmatprep.subr.mxu0 0.0
    %237 = vmatpush1.msra.mxu0 0.0
    %238 = vmatprep.subr.mxu0 0.0
    %239 = vmatpush1.msra.mxu0 0.0
    %240 = vmatprep.subr.mxu0 0.0
    %241 = vmatpush1.msra.mxu0 0.0
    %242 = vmatprep.subr.mxu0 0.0
    %243 = vmatpush1.msra.mxu0 0.0
    %244 = vmatprep.subr.mxu0 0.0
    %245 = vmatpush1.msra.mxu0 0.0
    %246 = vmatprep.subr.mxu0 0.0
    %247 = vmatpush1.msra.mxu0 0.0
    %248 = vmatprep.subr.mxu0 0.0
    %249 = vmatpush1.msra.mxu0 0.0
    %250 = vmatprep.subr.mxu0 0.0
    %251 = vmatpush1.msra.mxu0 0.0
    %252 = vmatprep.subr.mxu0 0.0
    %253 = vmatpush1.msra.mxu0 0.0
    %254 = vmatprep.subr.mxu0 0.0
    %255 = vmatpush1.msra.mxu0 0.0
    %256 = vmatprep.subr.mxu0 0.0
    %257 = vmatpush1.msra.mxu0 0.0
    %258 = vmatprep.subr.mxu0 0.0
    %259 = vmatpush1.msra.mxu0 0.0
    %260 = vmatprep.subr.mxu0 0.0
    %261 = vmatpush1.msra.mxu0 0.0
    %262 = vmatprep.subr.mxu0 0.0
    %263 = vmatpush1.msra.mxu0 0.0
    %264 = vmatprep.mubr.f32.mxu0 0.0
    %265 = vmatmul.mubr.f32.gmra.mrb[0].mxu0 %v42
    %v266 = vpop.f32.mrb[0].mxu0
    %v267 = vadd.f32 %v107, %v266
    %v268 = vpop.f32.mrb[0].mxu0
    %269 = vmatprep.mubr.f32.mxu0 0.0
    %270 = vmatmul.mubr.f32.gmra.mrb[0].mxu0 %v43
    %v271 = vpop.f32.mrb[0].mxu0
    %v272 = vadd.f32 %v107, %v271
    %v273 = vpop.f32.mrb[0].mxu0
    %274 = vmatprep.mubr.f32.mxu0 0.0
    %275 = vmatmul.mubr.f32.gmra.mrb[0].mxu0 %v44
    %v276 = vpop.f32.mrb[0].mxu0
    %v277 = vadd.f32 %v107, %v276
    %v278 = vpop.f32.mrb[0].mxu0
    %279 = vmatprep.mubr.f32.mxu0 0.0
    %280 = vmatmul.mubr.f32.gmra.mrb[0].mxu0 %v45
    %v281 = vpop.f32.mrb[0].mxu0
    %v282 = vadd.f32 %v107, %v281
    %v283 = vpop.f32.mrb[0].mxu0
    %284 = vdwg.mxu0
    %285 = vst [vmem:[%s3] sm:$0xff] %v178
    %286 = vst [vmem:[%s3 + $0x8] sm:$0xff] %v180
    %287 = vst [vmem:[%s3 + $0x10] sm:$0xff] %v267
    %288 = vst [vmem:[%s3 + $0x18] sm:$0xff] %v184
    %289 = vst [vmem:[%s3 + $0x20] sm:$0xff] %v186
    %290 = vst [vmem:[%s3 + $0x28] sm:$0xff] %v272
    %291 = vst [vmem:[%s3 + $0x30] sm:$0xff] %v190
    %292 = vst [vmem:[%s3 + $0x38] sm:$0xff] %v192
    %293 = vst [vmem:[%s3 + $0x40] sm:$0xff] %v277
    %294 = vst [vmem:[%s3 + $0x48] sm:$0xff] %v196
    %295 = vst [vmem:[%s3 + $0x50] sm:$0xff] %v198
    %296 = vst [vmem:[%s3 + $0x58] sm:$0xff] %v282
    // Predicated region
    $region22: #{attention_forward.3} parent=1 // pred_check
      _
    $region23: #{attention_forward.3} parent=1 // pred_check_branch
      %298 = sbr.rel (0) target = $region25
    $region24: #{attention_forward.3} parent=1 // pred_region
      _
    $region25: #{attention_forward.3} parent=1 // pred_fallthru
      _
    // Predicated region
    $region26: #{attention_forward.3} parent=1 // pred_check
      _
    $region27: #{attention_forward.3} parent=1 // pred_check_branch
      %300 = sbr.rel (0) target = $region29
    $region28: #{attention_forward.3} parent=1 // pred_region
      _
    $region29: #{attention_forward.3} parent=1 // pred_fallthru
      _
    %301 = vsyncpa [#allocation3], 1
    %302 = vsyncpa [#allocation5], 1

// kernel: attention_forward.4
$region0: #{attention_forward.4}
  #allocation0 [shape = 'u32[]', space=smem, size = 0x4, offset = 0x4, fixed_abs, tag = 'smem constant byte address 0x4 - core index']
  #allocation1 [shape = 'u32[144,128]{1,0:T(1,128)}', space=vmem, size = 0x12000, scoped, tag = 'internal scratch']
  %s0 = inlined_call_operand.vmem [shape: f32[8,16,32], index: 0, kind: input, shape index: {}]
  %s1 = inlined_call_operand.vmem [shape: f32[8,16,32], index: 1, kind: input, shape index: {}]
  %s2 = inlined_call_operand.vmem [shape: f32[8,16,32], index: 2, kind: input, shape index: {}]
  %s3 = inlined_call_operand.vmem [shape: f32[8,16,16], index: 3, kind: input, shape index: {}]
  %s4 = inlined_call_operand.vmem [shape: f32[8,16,32], index: 4, kind: output, shape index: {}]
  %s5 = sld [smem:[#allocation0]]
  $region49: #{attention_forward.4} parent=0
    _
  %s7 = ssub.s32 1, %s5
  %s8 = scalar_select 0, %s7, %s5
  loop: start=0, step=1, limit=10
  $region2: #{attention_forward.4} parent=0 // loop_pre_header
    _
  $region3: #{attention_forward.4} parent=0 // loop_header
    %s10 = sphi 0, %s14
    %p11 = scmp.ge.s32.totalorder %s10, 10
    %s17 = sphi 0, %s29
    %s18 = sphi 0, %s25
    %s19 = sphi 0, %s17
    %s20 = sphi 0, %s18
    %s21 = sphi 0, %s19
    %s22 = sphi 0, %s20
    %s34 = sphi 0, %s36
    %s37 = sphi 0, %s34
    %s38 = sphi 0, %s37
    %s54 = sphi 0, %s38
    %s60 = sphi 0, %s62
    %s63 = sphi 0, %s60
    %s64 = sphi 0, %s63
    %s80 = sphi 0, %s64
    %s86 = sphi 0, %s88
    %s89 = sphi 0, %s86
    %s90 = sphi 0, %s89
    %s106 = sphi 0, %s90
    %s114 = sphi 0, %s116
    %s117 = sphi 0, %s114
    %s118 = sphi 0, %s117
    %s134 = sphi 0, %s118
    %s142 = sphi 0, %s144
    %s145 = sphi 0, %s142
    %s146 = sphi 0, %s145
    %s162 = sphi 0, %s146
  $region4: #{attention_forward.4} parent=0 // loop_header_branch
    %13 = sbr.rel (%p11) target = $region8
  $region5: #{attention_forward.4} parent=0 // loop_body
    %s15 = ssub.s32 %s10, 1
    %s16 = ssub.s32 %s10, 2
    %s23 = sadd.s32 1, %s18
    %p24 = scmp.ge.s32.totalorder %s23, 1
    %s25 = scalar_select %p24, 0, %s23
    %s26 = sadd.s32 1, %s17
    %s27 = scalar_select %p24, %s26, %s17
    %p28 = scmp.ge.s32.totalorder %s27, 8
    %s29 = scalar_select %p28, 0, %s27
    %s30 = ssub.s32 %s17, %s29
    %s31 = ssub.s32 %s18, %s25
    %s32 = sor.u32 %s30, %s31
    %p33 = scmp.eq.s32.totalorder %s32, 0
    %s35 = sadd.s32 %s34, 1
    %s36 = scalar_select %p33, %s34, %s35
    %p39 = pneg %p33
    %p40 = scmp.eq.s32.totalorder %s10, 7
    %p41 = por %p39, %p40
    %p42 = scmp.ne.s32.totalorder %s34, %s37
    %p43 = scmp.eq.s32.totalorder %s10, 0
    %p44 = por %p42, %p43
    %p45 = scmp.ne.s32.totalorder %s34, %s37
    %p46 = scmp.eq.s32.totalorder %s15, 7
    %p47 = por %p45, %p46
    %p48 = scmp.ne.s32.totalorder %s37, %s38
    %p49 = scmp.eq.s32.totalorder %s15, 0
    %p50 = por %p48, %p49
    %p51 = scmp.ne.s32.totalorder %s37, %s38
    %p52 = scmp.eq.s32.totalorder %s16, 7
    %p53 = por %p51, %p52
    %p55 = scmp.ne.s32.totalorder %s38, %s54
    %p56 = scmp.eq.s32.totalorder %s16, 0
    %p57 = por %p55, %p56
    %s58 = ssub.s32 %s17, %s29
    %p59 = scmp.eq.s32.totalorder %s58, 0
    %s61 = sadd.s32 %s60, 1
    %s62 = scalar_select %p59, %s60, %s61
    %p65 = pneg %p59
    %p66 = scmp.eq.s32.totalorder %s10, 7
    %p67 = por %p65, %p66
    %p68 = scmp.ne.s32.totalorder %s60, %s63
    %p69 = scmp.eq.s32.totalorder %s10, 0
    %p70 = por %p68, %p69
    %p71 = scmp.ne.s32.totalorder %s60, %s63
    %p72 = scmp.eq.s32.totalorder %s15, 7
    %p73 = por %p71, %p72
    %p74 = scmp.ne.s32.totalorder %s63, %s64
    %p75 = scmp.eq.s32.totalorder %s15, 0
    %p76 = por %p74, %p75
    %p77 = scmp.ne.s32.totalorder %s63, %s64
    %p78 = scmp.eq.s32.totalorder %s16, 7
    %p79 = por %p77, %p78
    %p81 = scmp.ne.s32.totalorder %s64, %s80
    %p82 = scmp.eq.s32.totalorder %s16, 0
    %p83 = por %p81, %p82
    %s84 = ssub.s32 %s17, %s29
    %p85 = scmp.eq.s32.totalorder %s84, 0
    %s87 = sadd.s32 %s86, 1
    %s88 = scalar_select %p85, %s86, %s87
    %p91 = pneg %p85
    %p92 = scmp.eq.s32.totalorder %s10, 7
    %p93 = por %p91, %p92
    %p94 = scmp.ne.s32.totalorder %s86, %s89
    %p95 = scmp.eq.s32.totalorder %s10, 0
    %p96 = por %p94, %p95
    %p97 = scmp.ne.s32.totalorder %s86, %s89
    %p98 = scmp.eq.s32.totalorder %s15, 7
    %p99 = por %p97, %p98
    %p100 = scmp.ne.s32.totalorder %s89, %s90
    %p101 = scmp.eq.s32.totalorder %s15, 0
    %p102 = por %p100, %p101
    %p103 = scmp.ne.s32.totalorder %s89, %s90
    %p104 = scmp.eq.s32.totalorder %s16, 7
    %p105 = por %p103, %p104
    %p107 = scmp.ne.s32.totalorder %s90, %s106
    %p108 = scmp.eq.s32.totalorder %s16, 0
    %p109 = por %p107, %p108
    %s110 = ssub.s32 %s17, %s29
    %s111 = ssub.s32 %s18, %s25
    %s112 = sor.u32 %s110, %s111
    %p113 = scmp.eq.s32.totalorder %s112, 0
    %s115 = sadd.s32 %s114, 1
    %s116 = scalar_select %p113, %s114, %s115
    %p119 = pneg %p113
    %p120 = scmp.eq.s32.totalorder %s10, 7
    %p121 = por %p119, %p120
    %p122 = scmp.ne.s32.totalorder %s114, %s117
    %p123 = scmp.eq.s32.totalorder %s10, 0
    %p124 = por %p122, %p123
    %p125 = scmp.ne.s32.totalorder %s114, %s117
    %p126 = scmp.eq.s32.totalorder %s15, 7
    %p127 = por %p125, %p126
    %p128 = scmp.ne.s32.totalorder %s117, %s118
    %p129 = scmp.eq.s32.totalorder %s15, 0
    %p130 = por %p128, %p129
    %p131 = scmp.ne.s32.totalorder %s117, %s118
    %p132 = scmp.eq.s32.totalorder %s16, 7
    %p133 = por %p131, %p132
    %p135 = scmp.ne.s32.totalorder %s118, %s134
    %p136 = scmp.eq.s32.totalorder %s16, 0
    %p137 = por %p135, %p136
    %s138 = ssub.s32 %s17, %s29
    %s139 = ssub.s32 %s18, %s25
    %s140 = sor.u32 %s138, %s139
    %p141 = scmp.eq.s32.totalorder %s140, 0
    %s143 = sadd.s32 %s142, 1
    %s144 = scalar_select %p141, %s142, %s143
    %p147 = pneg %p141
    %p148 = scmp.eq.s32.totalorder %s10, 7
    %p149 = por %p147, %p148
    %p150 = scmp.ne.s32.totalorder %s142, %s145
    %p151 = scmp.eq.s32.totalorder %s10, 0
    %p152 = por %p150, %p151
    %p153 = scmp.ne.s32.totalorder %s142, %s145
    %p154 = scmp.eq.s32.totalorder %s15, 7
    %p155 = por %p153, %p154
    %p156 = scmp.ne.s32.totalorder %s145, %s146
    %p157 = scmp.eq.s32.totalorder %s15, 0
    %p158 = por %p156, %p157
    %p159 = scmp.ne.s32.totalorder %s145, %s146
    %p160 = scmp.eq.s32.totalorder %s16, 7
    %p161 = por %p159, %p160
    %p163 = scmp.ne.s32.totalorder %s146, %s162
    %p164 = scmp.eq.s32.totalorder %s16, 0
    %p165 = por %p163, %p164
    %p166 = scmp.le.s32.totalorder 1, %s10
    %p167 = scmp.lt.s32.totalorder %s10, 9
    %p168 = pnand %p166, %p167
    %p169 = pneg %p168
    // Predicated region
    $region9: #{attention_forward.4} parent=5 // pred_check
      _
    $region10: #{attention_forward.4} parent=5 // pred_check_branch
      %171 = sbr.rel (%p168) target = $region12
    $region11: #{attention_forward.4} parent=5 // pred_region
      %s172 = ssub.s32 %s10, 1
    $region12: #{attention_forward.4} parent=5 // pred_fallthru
      _
    %p173 = scmp.lt.s32.totalorder %s10, 8
    // Predicated region
    $region13: #{attention_forward.4} parent=5 // pred_check
      %p174 = pneg %p173
    $region14: #{attention_forward.4} parent=5 // pred_check_branch
      %176 = sbr.rel (%p174) target = $region16
    $region15: #{attention_forward.4} parent=5 // pred_region
      // Predicated region
      $region17: #{attention_forward.4} parent=15 // pred_check
        %p177 = pneg %p44
      $region18: #{attention_forward.4} parent=15 // pred_check_branch
        %179 = sbr.rel (%p177) target = $region20
      $region19: #{attention_forward.4} parent=15 // pred_region
        %s180 = smul.u32 2, %s18
        %p181 = scmp.lt.s32.totalorder %s17, 7
        %s182 = scalar_select %p181, %s17, 7
        %p183 = scmp.lt.s32.totalorder %s180, 1
        %s184 = scalar_select %p183, %s180, 1
        %s185 = smul.addr %s182, 2
        %s186 = sadd.s32 %s184, %s185
        %s187 = smul.addr %s186, 8
        %s188 = scalar_lea.vmem %s0, %s187
        %s189 = smul.u32 2, %s18
      $region20: #{attention_forward.4} parent=15 // pred_fallthru
        _
      // Predicated region
      $region21: #{attention_forward.4} parent=15 // pred_check
        %p190 = pneg %p70
      $region22: #{attention_forward.4} parent=15 // pred_check_branch
        %192 = sbr.rel (%p190) target = $region24
      $region23: #{attention_forward.4} parent=15 // pred_region
        %p193 = scmp.lt.s32.totalorder %s17, 7
        %s194 = scalar_select %p193, %s17, 7
        %s195 = smul.addr %s194, 2
        %s196 = smul.addr %s195, 8
        %s197 = scalar_lea.vmem %s1, %s196
      $region24: #{attention_forward.4} parent=15 // pred_fallthru
        _
      // Predicated region
      $region25: #{attention_forward.4} parent=15 // pred_check
        %p198 = pneg %p96
      $region26: #{attention_forward.4} parent=15 // pred_check_branch
        %200 = sbr.rel (%p198) target = $region28
      $region27: #{attention_forward.4} parent=15 // pred_region
        %p201 = scmp.lt.s32.totalorder %s17, 7
        %s202 = scalar_select %p201, %s17, 7
        %s203 = smul.addr %s202, 2
        %s204 = smul.addr %s203, 8
        %s205 = scalar_lea.vmem %s2, %s204
      $region28: #{attention_forward.4} parent=15 // pred_fallthru
        _
      // Predicated region
      $region29: #{attention_forward.4} parent=15 // pred_check
        %p206 = pneg %p124
      $region30: #{attention_forward.4} parent=15 // pred_check_branch
        %208 = sbr.rel (%p206) target = $region32
      $region31: #{attention_forward.4} parent=15 // pred_region
        %s209 = smul.u32 2, %s18
        %p210 = scmp.lt.s32.totalorder %s17, 7
        %s211 = scalar_select %p210, %s17, 7
        %p212 = scmp.lt.s32.totalorder %s209, 1
        %s213 = scalar_select %p212, %s209, 1
        %s214 = smul.addr %s211, 2
        %s215 = sadd.s32 %s213, %s214
        %s216 = smul.addr %s215, 8
        %s217 = scalar_lea.vmem %s3, %s216
        %s218 = smul.u32 2, %s18
      $region32: #{attention_forward.4} parent=15 // pred_fallthru
        _
    $region16: #{attention_forward.4} parent=5 // pred_fallthru
      _
    %p219 = scmp.le.s32.totalorder 1, %s10
    %p220 = scmp.lt.s32.totalorder %s10, 9
    %p221 = pnand %p219, %p220
    %p222 = pneg %p221
    // Predicated region
    $region33: #{attention_forward.4} parent=5 // pred_check
      _
    $region34: #{attention_forward.4} parent=5 // pred_check_branch
      %224 = sbr.rel (%p221) target = $region36
    $region35: #{attention_forward.4} parent=5 // pred_region
      %s225 = ssub.s32 %s10, 1
      %s226 = smul.u32 2, %s20
      %p227 = scmp.lt.s32.totalorder %s19, 7
      %s228 = scalar_select %p227, %s19, 7
      %p229 = scmp.lt.s32.totalorder %s226, 1
      %s230 = scalar_select %p229, %s226, 1
      %s231 = smul.addr %s228, 2
      %s232 = sadd.s32 %s230, %s231
      %s233 = smul.addr %s232, 8
      %s234 = scalar_lea.vmem %s0, %s233
      %p235 = pneg %p50
      %p236 = pneg %p47
      %p237 = scmp.lt.s32.totalorder %s19, 7
      %s238 = scalar_select %p237, %s19, 7
      %s239 = smul.addr %s238, 2
      %s240 = smul.addr %s239, 8
      %s241 = scalar_lea.vmem %s1, %s240
      %p242 = pneg %p76
      %p243 = pneg %p73
      %p244 = scmp.lt.s32.totalorder %s19, 7
      %s245 = scalar_select %p244, %s19, 7
      %s246 = smul.addr %s245, 2
      %s247 = smul.addr %s246, 8
      %s248 = scalar_lea.vmem %s2, %s247
      %p249 = pneg %p102
      %p250 = pneg %p99
      %s251 = smul.u32 2, %s20
      %p252 = scmp.lt.s32.totalorder %s19, 7
      %s253 = scalar_select %p252, %s19, 7
      %p254 = scmp.lt.s32.totalorder %s251, 1
      %s255 = scalar_select %p254, %s251, 1
      %s256 = smul.addr %s253, 2
      %s257 = sadd.s32 %s255, %s256
      %s258 = smul.addr %s257, 8
      %s259 = scalar_lea.vmem %s3, %s258
      %p260 = pneg %p130
      %p261 = pneg %p127
      %p262 = pneg %p158
      %p263 = pneg %p155
      %s264 = smul.u32 2, %s20
      %p265 = scmp.lt.s32.totalorder %s19, 7
      %s266 = scalar_select %p265, %s19, 7
      %p267 = scmp.lt.s32.totalorder %s264, 1
      %s268 = scalar_select %p267, %s264, 1
      %s269 = smul.addr %s266, 2
      %s270 = sadd.s32 %s268, %s269
      %s271 = smul.addr %s270, 8
      %s272 = scalar_lea.vmem %s4, %s271
      %s273 = smul.u32 2, %s20
      %p274 = scmp.lt.s32.totalorder %s19, 7
      %s275 = scalar_select %p274, %s19, 7
      %p276 = scmp.lt.s32.totalorder %s273, 1
      %s277 = scalar_select %p276, %s273, 1
      %s278 = smul.addr %s275, 2
      %s279 = sadd.s32 %s277, %s278
      %s280 = smul.addr %s279, 8
      %s281 = scalar_lea.vmem %s0, %s280
      %s282 = smul.u32 2, %s20
      %p283 = scmp.lt.s32.totalorder %s19, 7
      %s284 = scalar_select %p283, %s19, 7
      %s285 = smul.addr %s284, 2
      %s286 = smul.addr %s285, 8
      %s287 = scalar_lea.vmem %s1, %s286
      %p288 = scmp.lt.s32.totalorder %s19, 7
      %s289 = scalar_select %p288, %s19, 7
      %s290 = smul.addr %s289, 2
      %s291 = smul.addr %s290, 8
      %s292 = scalar_lea.vmem %s2, %s291
      %s293 = smul.u32 2, %s20
      %p294 = scmp.lt.s32.totalorder %s19, 7
      %s295 = scalar_select %p294, %s19, 7
      %p296 = scmp.lt.s32.totalorder %s293, 1
      %s297 = scalar_select %p296, %s293, 1
      %s298 = smul.addr %s295, 2
      %s299 = sadd.s32 %s297, %s298
      %s300 = smul.addr %s299, 8
      %s301 = scalar_lea.vmem %s3, %s300
      %s302 = smul.u32 2, %s20
      %s303 = smul.u32 2, %s20
      %p304 = scmp.lt.s32.totalorder %s19, 7
      %s305 = scalar_select %p304, %s19, 7
      %p306 = scmp.lt.s32.totalorder %s303, 1
      %s307 = scalar_select %p306, %s303, 1
      %s308 = smul.addr %s305, 2
      %s309 = sadd.s32 %s307, %s308
      %s310 = smul.addr %s309, 8
      %s311 = scalar_lea.vmem %s4, %s310
      %s312 = smul.u32 2, %s20
      %v313 = vld [vmem:[%s281] sm:$0xff]
      %v314 = vld [vmem:[%s281 + $0x8] sm:$0xff]
      %v315 = vld [vmem:[%s287] sm:$0xff]
      %v316 = vld [vmem:[%s287 + $0x8] sm:$0xff]
      %v317 = vld [vmem:[%s292] sm:$0xff]
      %v318 = vld [vmem:[%s292 + $0x8] sm:$0xff]
      %vm319 = vcmask 261120
      %v321 = vsel %vm319, %v313, 0
      %v324 = vsel %vm319, %v314, 0
      %v327 = vsel %vm319, %v315, 0
      %v330 = vsel %vm319, %v316, 0
      %332 = vmatprep.subr.mxu0 0.0
      %333 = vmatpush1.xpose.msra.mxu0 %v327
      %334 = vmatprep.subr.mxu0 0.0
      %335 = vmatpush1.xpose.msra.mxu0 %v330
      %336 = vmatprep.subr.mxu0 0.0
      %337 = vmatpush1.xpose.msra.mxu0 0.0
      %338 = vmatprep.subr.mxu0 0.0
      %339 = vmatpush1.xpose.msra.mxu0 0.0
      %340 = vmatprep.subr.mxu0 0.0
      %341 = vmatpush1.xpose.msra.mxu0 0.0
      %342 = vmatprep.subr.mxu0 0.0
      %343 = vmatpush1.xpose.msra.mxu0 0.0
      %344 = vmatprep.subr.mxu0 0.0
      %345 = vmatpush1.xpose.msra.mxu0 0.0
      %346 = vmatprep.subr.mxu0 0.0
      %347 = vmatpush1.xpose.msra.mxu0 0.0
      %348 = vmatprep.subr.mxu0 0.0
      %349 = vmatpush1.xpose.msra.mxu0 0.0
      %350 = vmatprep.subr.mxu0 0.0
      %351 = vmatpush1.xpose.msra.mxu0 0.0
      %352 = vmatprep.subr.mxu0 0.0
      %353 = vmatpush1.xpose.msra.mxu0 0.0
      %354 = vmatprep.subr.mxu0 0.0
      %355 = vmatpush1.xpose.msra.mxu0 0.0
      %356 = vmatprep.subr.mxu0 0.0
      %357 = vmatpush1.xpose.msra.mxu0 0.0
      %358 = vmatprep.subr.mxu0 0.0
      %359 = vmatpush1.xpose.msra.mxu0 0.0
      %360 = vmatprep.subr.mxu0 0.0
      %361 = vmatpush1.xpose.msra.mxu0 0.0
      %362 = vmatprep.subr.mxu0 0.0
      %363 = vmatpush1.xpose.msra.mxu0 0.0
      %364 = vmatprep.subr.mxu0 0.0
      %365 = vmatpush1.xpose.msra.mxu0 0.0
      %366 = vmatprep.subr.mxu0 0.0
      %367 = vmatpush1.xpose.msra.mxu0 0.0
      %368 = vmatprep.subr.mxu0 0.0
      %369 = vmatpush1.xpose.msra.mxu0 0.0
      %370 = vmatprep.subr.mxu0 0.0
      %371 = vmatpush1.xpose.msra.mxu0 0.0
      %372 = vmatprep.subr.mxu0 0.0
      %373 = vmatpush1.xpose.msra.mxu0 0.0
      %374 = vmatprep.subr.mxu0 0.0
      %375 = vmatpush1.xpose.msra.mxu0 0.0
      %376 = vmatprep.subr.mxu0 0.0
      %377 = vmatpush1.xpose.msra.mxu0 0.0
      %378 = vmatprep.subr.mxu0 0.0
      %379 = vmatpush1.xpose.msra.mxu0 0.0
      %380 = vmatprep.subr.mxu0 0.0
      %381 = vmatpush1.xpose.msra.mxu0 0.0
      %382 = vmatprep.subr.mxu0 0.0
      %383 = vmatpush1.xpose.msra.mxu0 0.0
      %384 = vmatprep.subr.mxu0 0.0
      %385 = vmatpush1.xpose.msra.mxu0 0.0
      %386 = vmatprep.subr.mxu0 0.0
      %387 = vmatpush1.xpose.msra.mxu0 0.0
      %388 = vmatprep.subr.mxu0 0.0
      %389 = vmatpush1.xpose.msra.mxu0 0.0
      %390 = vmatprep.subr.mxu0 0.0
      %391 = vmatpush1.xpose.msra.mxu0 0.0
      %392 = vmatprep.subr.mxu0 0.0
      %393 = vmatpush1.xpose.msra.mxu0 0.0
      %394 = vmatprep.subr.mxu0 0.0
      %395 = vmatpush1.xpose.msra.mxu0 0.0
      %396 = vmatprep.mubr.f32.mxu0 0.0
      %397 = vmatmul.mubr.f32.gmra.mrb[0].mxu0 %v321
      %v398 = vpop.f32.mrb[0].mxu0
      %v399 = vadd.f32 0.0, %v398
      %v400 = vpop.f32.mrb[0].mxu0
      %401 = vmatprep.mubr.f32.mxu0 0.0
      %402 = vmatmul.mubr.f32.gmra.mrb[0].mxu0 %v324
      %v403 = vpop.f32.mrb[0].mxu0
      %v404 = vadd.f32 0.0, %v403
      %v405 = vpop.f32.mrb[0].mxu0
      %406 = vdwg.mxu0
      %v407 = vmul.f32 %v399, 0.17677669
      %v408 = vmul.f32 %v404, 0.17677669
      %v409 = vld [vmem:[%s301] sm:$0xff]
      %v410 = vld [vmem:[%s301 + $0x8] sm:$0xff]
      %v411 = vadd.f32 %v407, %v409
      %v412 = vadd.f32 %v408, %v410
      %vm413 = vcmask 130048
      %v414 = vsel %vm413, %v411, -inf
      %415 = vmax.xlane.f32.xlu0 %v414
      %v416 = vpop.xlane.xlu0 %415
      %v417 = vsel %vm413, %v412, -inf
      %418 = vmax.xlane.f32.xlu0 %v417
      %v419 = vpop.xlane.xlu0 %418
      %v420 = vsub.f32 %v411, %v416
      %v421 = vsub.f32 %v412, %v419
      %v422 = vmul.f32 %v420, 1.442695
      %v423 = vpow.pop %v422
      %v424 = vmul.f32 %v421, 1.442695
      %v425 = vpow.pop %v424
      %v426 = vsel %vm413, %v423, 0.0
      %427 = vadd.xlane.f32.xlu0 %v426
      %v428 = vpop.xlane.xlu0 %427
      %v429 = vsel %vm413, %v425, 0.0
      %430 = vadd.xlane.f32.xlu0 %v429
      %v431 = vpop.xlane.xlu0 %430
      %v432 = vrcp.pop %v428
      %v433 = vmul.f32 %v423, %v432
      %v434 = vrcp.pop %v431
      %v435 = vmul.f32 %v425, %v434
      %v437 = vsel %vm413, %v433, 0
      %v440 = vsel %vm413, %v435, 0
      %442 = vmatprep.subr.mxu0 0.0
      %443 = vmatpush1.msra.mxu0 %v317
      %444 = vmatprep.subr.mxu0 0.0
      %445 = vmatpush1.msra.mxu0 %v318
      %446 = vmatprep.subr.mxu0 0.0
      %447 = vmatpush1.msra.mxu0 0.0
      %448 = vmatprep.subr.mxu0 0.0
      %449 = vmatpush1.msra.mxu0 0.0
      %450 = vmatprep.subr.mxu0 0.0
      %451 = vmatpush1.msra.mxu0 0.0
      %452 = vmatprep.subr.mxu0 0.0
      %453 = vmatpush1.msra.mxu0 0.0
      %454 = vmatprep.subr.mxu0 0.0
      %455 = vmatpush1.msra.mxu0 0.0
      %456 = vmatprep.subr.mxu0 0.0
      %457 = vmatpush1.msra.mxu0 0.0
      %458 = vmatprep.subr.mxu0 0.0
      %459 = vmatpush1.msra.mxu0 0.0
      %460 = vmatprep.subr.mxu0 0.0
      %461 = vmatpush1.msra.mxu0 0.0
      %462 = vmatprep.subr.mxu0 0.0
      %463 = vmatpush1.msra.mxu0 0.0
      %464 = vmatprep.subr.mxu0 0.0
      %465 = vmatpush1.msra.mxu0 0.0
      %466 = vmatprep.subr.mxu0 0.0
      %467 = vmatpush1.msra.mxu0 0.0
      %468 = vmatprep.subr.mxu0 0.0
      %469 = vmatpush1.msra.mxu0 0.0
      %470 = vmatprep.subr.mxu0 0.0
      %471 = vmatpush1.msra.mxu0 0.0
      %472 = vmatprep.subr.mxu0 0.0
      %473 = vmatpush1.msra.mxu0 0.0
      %474 = vmatprep.subr.mxu0 0.0
      %475 = vmatpush1.msra.mxu0 0.0
      %476 = vmatprep.subr.mxu0 0.0
      %477 = vmatpush1.msra.mxu0 0.0
      %478 = vmatprep.subr.mxu0 0.0
      %479 = vmatpush1.msra.mxu0 0.0
      %480 = vmatprep.subr.mxu0 0.0
      %481 = vmatpush1.msra.mxu0 0.0
      %482 = vmatprep.subr.mxu0 0.0
      %483 = vmatpush1.msra.mxu0 0.0
      %484 = vmatprep.subr.mxu0 0.0
      %485 = vmatpush1.msra.mxu0 0.0
      %486 = vmatprep.subr.mxu0 0.0
      %487 = vmatpush1.msra.mxu0 0.0
      %488 = vmatprep.subr.mxu0 0.0
      %489 = vmatpush1.msra.mxu0 0.0
      %490 = vmatprep.subr.mxu0 0.0
      %491 = vmatpush1.msra.mxu0 0.0
      %492 = vmatprep.subr.mxu0 0.0
      %493 = vmatpush1.msra.mxu0 0.0
      %494 = vmatprep.subr.mxu0 0.0
      %495 = vmatpush1.msra.mxu0 0.0
      %496 = vmatprep.subr.mxu0 0.0
      %497 = vmatpush1.msra.mxu0 0.0
      %498 = vmatprep.subr.mxu0 0.0
      %499 = vmatpush1.msra.mxu0 0.0
      %500 = vmatprep.subr.mxu0 0.0
      %501 = vmatpush1.msra.mxu0 0.0
      %502 = vmatprep.subr.mxu0 0.0
      %503 = vmatpush1.msra.mxu0 0.0
      %504 = vmatprep.subr.mxu0 0.0
      %505 = vmatpush1.msra.mxu0 0.0
      %506 = vmatprep.mubr.f32.mxu0 0.0
      %507 = vmatmul.mubr.f32.gmra.mrb[0].mxu0 %v437
      %v508 = vpop.f32.mrb[0].mxu0
      %v509 = vadd.f32 0.0, %v508
      %v510 = vpop.f32.mrb[0].mxu0
      %511 = vmatprep.mubr.f32.mxu0 0.0
      %512 = vmatmul.mubr.f32.gmra.mrb[0].mxu0 %v440
      %v513 = vpop.f32.mrb[0].mxu0
      %v514 = vadd.f32 0.0, %v513
      %v515 = vpop.f32.mrb[0].mxu0
      %516 = vdwg.mxu0
      %517 = vst.msk [vmem:[%s311] sm:$0xff] %vm319, %v509
      %518 = vst.msk [vmem:[%s311 + $0x8] sm:$0xff] %vm319, %v514
      %s519 = smul.u32 2, %s20
      %p520 = scmp.lt.s32.totalorder %s19, 7
      %s521 = scalar_select %p520, %s19, 7
      %p522 = scmp.lt.s32.totalorder %s519, 1
      %s523 = scalar_select %p522, %s519, 1
      %s524 = smul.addr %s521, 2
      %s525 = sadd.s32 %s523, %s524
      %s526 = smul.addr %s525, 8
      %s527 = scalar_lea.vmem %s4, %s526
      // Predicated region
      $region37: #{attention_forward.4} parent=35 // pred_check
        %p528 = pneg %p155
      $region38: #{attention_forward.4} parent=35 // pred_check_branch
        %530 = sbr.rel (%p528) target = $region40
      $region39: #{attention_forward.4} parent=35 // pred_region
        %s531 = smul.u32 2, %s20
      $region40: #{attention_forward.4} parent=35 // pred_fallthru
        _
    $region36: #{attention_forward.4} parent=5 // pred_fallthru
      _
    %p532 = scmp.le.s32.totalorder 2, %s10
    // Predicated region
    $region41: #{attention_forward.4} parent=5 // pred_check
      %p533 = pneg %p532
    $region42: #{attention_forward.4} parent=5 // pred_check_branch
      %535 = sbr.rel (%p533) target = $region44
    $region43: #{attention_forward.4} parent=5 // pred_region
      %s536 = ssub.s32 %s10, 2
      // Predicated region
      $region45: #{attention_forward.4} parent=43 // pred_check
        %p537 = pneg %p161
      $region46: #{attention_forward.4} parent=43 // pred_check_branch
        %539 = sbr.rel (%p537) target = $region48
      $region47: #{attention_forward.4} parent=43 // pred_region
        %s540 = smul.u32 2, %s22
        %p541 = scmp.lt.s32.totalorder %s21, 7
        %s542 = scalar_select %p541, %s21, 7
        %p543 = scmp.lt.s32.totalorder %s540, 1
        %s544 = scalar_select %p543, %s540, 1
        %s545 = smul.addr %s542, 2
        %s546 = sadd.s32 %s544, %s545
        %s547 = smul.addr %s546, 8
        %s548 = scalar_lea.vmem %s4, %s547
      $region48: #{attention_forward.4} parent=43 // pred_fallthru
        _
    $region44: #{attention_forward.4} parent=5 // pred_fallthru
      _
  $region6: #{attention_forward.4} parent=0 // loop_footer
    %s14 = sadd.s32 1, %s10
  $region7: #{attention_forward.4} parent=0 // loop_footer_branch
    %9 = sbr.rel target = $region3
  $region8: #{attention_forward.4} parent=0 // loop_exit
    _

// kernel: attention_forward.5
$region0: #{attention_forward.5}
  #allocation0 [shape = 'u32[]', space=smem, size = 0x4, offset = 0x4, fixed_abs, tag = 'smem constant byte address 0x4 - core index']
  #allocation1 [shape = 'u32[144,128]{1,0:T(1,128)}', space=vmem, size = 0x12000, scoped, tag = 'internal scratch']
  %s0 = inlined_call_operand.vmem [shape: f32[32,128], index: 0, kind: input, shape index: {}]
  %s1 = inlined_call_operand.vmem [shape: f32[128,128], index: 1, kind: input, shape index: {}]
  %s2 = inlined_call_operand.vmem [shape: f32[1,128], index: 2, kind: input, shape index: {}]
  %s3 = inlined_call_operand.hbm [shape: f32[32,128], index: 3, kind: output, shape index: {}]
  %s4 = sld [smem:[#allocation0]]
  $region22: #{attention_forward.5} parent=0
    _
  %s6 = ssub.s32 1, %s4
  %s7 = scalar_select 0, %s6, %s4
  $region1: #{attention_forward.5} parent=0
    #allocation2 [shape = 'u8[16384]{0}', space=vmem, size = 0x4000, scoped, tag = 'output window, operand 0, single buffered']
    #allocation3 [shape = 's32[1]{0}', space=sflag, size = 0x4, scoped, tag = 'scoped memory for attention_forward.5']
    %8 = vsyncpa [#allocation3], 0
    // Predicated region
    $region2: #{attention_forward.5} parent=1 // pred_check
      _
    $region3: #{attention_forward.5} parent=1 // pred_check_branch
      %10 = sbr.rel (0) target = $region5
    $region4: #{attention_forward.5} parent=1 // pred_region
      _
    $region5: #{attention_forward.5} parent=1 // pred_fallthru
      _
    // Predicated region
    $region6: #{attention_forward.5} parent=1 // pred_check
      _
    $region7: #{attention_forward.5} parent=1 // pred_check_branch
      %12 = sbr.rel (0) target = $region9
    $region8: #{attention_forward.5} parent=1 // pred_region
      _
    $region9: #{attention_forward.5} parent=1 // pred_fallthru
      _
    // Predicated region
    $region10: #{attention_forward.5} parent=1 // pred_check
      _
    $region11: #{attention_forward.5} parent=1 // pred_check_branch
      %14 = sbr.rel (0) target = $region13
    $region12: #{attention_forward.5} parent=1 // pred_region
      _
    $region13: #{attention_forward.5} parent=1 // pred_fallthru
      _
    %v15 = vld [vmem:[%s0] sm:$0xff]
    %v16 = vld [vmem:[%s0 + $0x8] sm:$0xff]
    %v17 = vld [vmem:[%s0 + $0x10] sm:$0xff]
    %v18 = vld [vmem:[%s0 + $0x18] sm:$0xff]
    %v19 = vld [vmem:[%s1] sm:$0xff]
    %v20 = vld [vmem:[%s1 + $0x8] sm:$0xff]
    %v21 = vld [vmem:[%s1 + $0x10] sm:$0xff]
    %v22 = vld [vmem:[%s1 + $0x18] sm:$0xff]
    %v23 = vld [vmem:[%s1 + $0x20] sm:$0xff]
    %v24 = vld [vmem:[%s1 + $0x28] sm:$0xff]
    %v25 = vld [vmem:[%s1 + $0x30] sm:$0xff]
    %v26 = vld [vmem:[%s1 + $0x38] sm:$0xff]
    %v27 = vld [vmem:[%s1 + $0x40] sm:$0xff]
    %v28 = vld [vmem:[%s1 + $0x48] sm:$0xff]
    %v29 = vld [vmem:[%s1 + $0x50] sm:$0xff]
    %v30 = vld [vmem:[%s1 + $0x58] sm:$0xff]
    %v31 = vld [vmem:[%s1 + $0x60] sm:$0xff]
    %v32 = vld [vmem:[%s1 + $0x68] sm:$0xff]
    %v33 = vld [vmem:[%s1 + $0x70] sm:$0xff]
    %v34 = vld [vmem:[%s1 + $0x78] sm:$0xff]
    %v35 = vld [vmem:[%s2] sm:$0x1]
    %v37 = vlaneseq
    %v38 = vshrl.u32 %v37, 7
    %v39 = vsub.s32 0, %v38
    %v40 = vrot.slane %v35, %v39
    %42 = vmatprep.subr.mxu0 0.0
    %43 = vmatpush1.msra.mxu0 %v19
    %44 = vmatprep.subr.mxu0 0.0
    %45 = vmatpush1.msra.mxu0 %v20
    %46 = vmatprep.subr.mxu0 0.0
    %47 = vmatpush1.msra.mxu0 %v21
    %48 = vmatprep.subr.mxu0 0.0
    %49 = vmatpush1.msra.mxu0 %v22
    %50 = vmatprep.subr.mxu0 0.0
    %51 = vmatpush1.msra.mxu0 %v23
    %52 = vmatprep.subr.mxu0 0.0
    %53 = vmatpush1.msra.mxu0 %v24
    %54 = vmatprep.subr.mxu0 0.0
    %55 = vmatpush1.msra.mxu0 %v25
    %56 = vmatprep.subr.mxu0 0.0
    %57 = vmatpush1.msra.mxu0 %v26
    %58 = vmatprep.subr.mxu0 0.0
    %59 = vmatpush1.msra.mxu0 %v27
    %60 = vmatprep.subr.mxu0 0.0
    %61 = vmatpush1.msra.mxu0 %v28
    %62 = vmatprep.subr.mxu0 0.0
    %63 = vmatpush1.msra.mxu0 %v29
    %64 = vmatprep.subr.mxu0 0.0
    %65 = vmatpush1.msra.mxu0 %v30
    %66 = vmatprep.subr.mxu0 0.0
    %67 = vmatpush1.msra.mxu0 %v31
    %68 = vmatprep.subr.mxu0 0.0
    %69 = vmatpush1.msra.mxu0 %v32
    %70 = vmatprep.subr.mxu0 0.0
    %71 = vmatpush1.msra.mxu0 %v33
    %72 = vmatprep.subr.mxu0 0.0
    %73 = vmatpush1.msra.mxu0 %v34
    %74 = vmatprep.subr.mxu0 0.0
    %75 = vmatpush1.msra.mxu0 0.0
    %76 = vmatprep.subr.mxu0 0.0
    %77 = vmatpush1.msra.mxu0 0.0
    %78 = vmatprep.subr.mxu0 0.0
    %79 = vmatpush1.msra.mxu0 0.0
    %80 = vmatprep.subr.mxu0 0.0
    %81 = vmatpush1.msra.mxu0 0.0
    %82 = vmatprep.subr.mxu0 0.0
    %83 = vmatpush1.msra.mxu0 0.0
    %84 = vmatprep.subr.mxu0 0.0
    %85 = vmatpush1.msra.mxu0 0.0
    %86 = vmatprep.subr.mxu0 0.0
    %87 = vmatpush1.msra.mxu0 0.0
    %88 = vmatprep.subr.mxu0 0.0
    %89 = vmatpush1.msra.mxu0 0.0
    %90 = vmatprep.subr.mxu0 0.0
    %91 = vmatpush1.msra.mxu0 0.0
    %92 = vmatprep.subr.mxu0 0.0
    %93 = vmatpush1.msra.mxu0 0.0
    %94 = vmatprep.subr.mxu0 0.0
    %95 = vmatpush1.msra.mxu0 0.0
    %96 = vmatprep.subr.mxu0 0.0
    %97 = vmatpush1.msra.mxu0 0.0
    %98 = vmatprep.subr.mxu0 0.0
    %99 = vmatpush1.msra.mxu0 0.0
    %100 = vmatprep.subr.mxu0 0.0
    %101 = vmatpush1.msra.mxu0 0.0
    %102 = vmatprep.subr.mxu0 0.0
    %103 = vmatpush1.msra.mxu0 0.0
    %104 = vmatprep.subr.mxu0 0.0
    %105 = vmatpush1.msra.mxu0 0.0
    %106 = vmatprep.mubr.f32.mxu0 0.0
    %107 = vmatmul.mubr.f32.gmra.mrb[0].mxu0 %v15
    %v108 = vpop.f32.mrb[0].mxu0
    %v109 = vadd.f32 %v40, %v108
    %v110 = vpop.f32.mrb[0].mxu0
    %111 = vmatprep.mubr.f32.mxu0 0.0
    %112 = vmatmul.mubr.f32.gmra.mrb[0].mxu0 %v16
    %v113 = vpop.f32.mrb[0].mxu0
    %v114 = vadd.f32 %v40, %v113
    %v115 = vpop.f32.mrb[0].mxu0
    %116 = vmatprep.mubr.f32.mxu0 0.0
    %117 = vmatmul.mubr.f32.gmra.mrb[0].mxu0 %v17
    %v118 = vpop.f32.mrb[0].mxu0
    %v119 = vadd.f32 %v40, %v118
    %v120 = vpop.f32.mrb[0].mxu0
    %121 = vmatprep.mubr.f32.mxu0 0.0
    %122 = vmatmul.mubr.f32.gmra.mrb[0].mxu0 %v18
    %v123 = vpop.f32.mrb[0].mxu0
    %v124 = vadd.f32 %v40, %v123
    %v125 = vpop.f32.mrb[0].mxu0
    %126 = vdwg.mxu0
    %127 = vst [vmem:[#allocation2] sm:$0xff] %v109
    %128 = vst [vmem:[#allocation2 + $0x8] sm:$0xff] %v114
    %129 = vst [vmem:[#allocation2 + $0x10] sm:$0xff] %v119
    %130 = vst [vmem:[#allocation2 + $0x18] sm:$0xff] %v124
    // Predicated region
    $region14: #{attention_forward.5} parent=1 // pred_check
      _
    $region15: #{attention_forward.5} parent=1 // pred_check_branch
      %132 = sbr.rel (0) target = $region17
    $region16: #{attention_forward.5} parent=1 // pred_region
      %s134 = ssub.s32 512, 512
      %135 = vsyncadd [#allocation3], %s134
      %s136 = sshll.u32 [#allocation2], 4
      %s137 = int_to_ptr.vmem [resolvable:$true] %s136
      %142 = dma.vmem_to_hbm [thread:$0]  %s137, 512, %s3, [#allocation3], 128, 128, 8
    $region17: #{attention_forward.5} parent=1 // pred_fallthru
      _
    // Predicated region
    $region18: #{attention_forward.5} parent=1 // pred_check
      _
    $region19: #{attention_forward.5} parent=1 // pred_check_branch
      %144 = sbr.rel (0) target = $region21
    $region20: #{attention_forward.5} parent=1 // pred_region
      %145 = dma.done [#allocation3], 512
    $region21: #{attention_forward.5} parent=1 // pred_fallthru
      _
    %146 = vsyncpa [#allocation3], 1

</llo_original>
